<compile_context>
chip_gen: v6e
topology: v6e:2x2x1
jax: 0.10.0
libtpu: 0.0.40
codegen_flags: <defaults>
</compile_context>

<pallas_src>
import functools
import math
from collections import OrderedDict

import jax
import jax.numpy as jnp
from jax.experimental import pallas as pl
from jax.experimental.pallas import tpu as pltpu


# ------------------------------- MLP kernel ----------------------------------

def _mlp_kernel(*refs, n_mlp):
    """refs = [emb, (w0, b0), ..., (w_{n-1}, b_{n-1}), out]."""
    emb_ref = refs[0]
    mlp_refs = refs[1:1 + 2 * n_mlp]
    o_ref = refs[1 + 2 * n_mlp]

    feats = emb_ref[...].astype(jnp.float32)
    for i in range(n_mlp):
        w = mlp_refs[2 * i][...]
        b = mlp_refs[2 * i + 1][...]
        feats = jnp.dot(feats, w, preferred_element_type=jnp.float32) + b
        if i < n_mlp - 1:                      # ReLU between consecutive Linears only
            feats = jnp.maximum(feats, 0.0)
    o_ref[...] = feats


def mlp_features(embedding, mlp_params):
    """embedding: (B, E); mlp_params: list of (w:(in,out), b:(1,out)).  -> (B, H) f32."""
    B, _ = embedding.shape
    H = mlp_params[-1][0].shape[1]
    n_mlp = len(mlp_params)

    in_specs = [pl.BlockSpec(embedding.shape, lambda i: (0, 0))]
    operands = [embedding]
    for w, b in mlp_params:
        in_specs.append(pl.BlockSpec(w.shape, lambda i: (0, 0)))
        in_specs.append(pl.BlockSpec(b.shape, lambda i: (0, 0)))
        operands += [w, b]

    return pl.pallas_call(
        functools.partial(_mlp_kernel, n_mlp=n_mlp),
        out_shape=jax.ShapeDtypeStruct((B, H), jnp.float32),
        grid_spec=pltpu.PrefetchScalarGridSpec(
            num_scalar_prefetch=0,
            grid=(1,),
            in_specs=in_specs,
            out_specs=pl.BlockSpec((B, H), lambda i: (0, 0)),
        ),
    )(*operands)


# --------------------------- fused head GEMV kernel ---------------------------

def _head_kernel(feats_ref, head_w_ref, head_b_ref, o_ref):
    """One lane-dense output tile of the concatenated parameter-generator matmul."""
    y = jnp.dot(feats_ref[...].astype(head_w_ref.dtype), head_w_ref[...],
                preferred_element_type=jnp.float32)
    y = y + head_b_ref[...].astype(jnp.float32)       # (1, tn) broadcasts over rows
    o_ref[...] = y.astype(o_ref.dtype)


def fused_head(feats, head_w, head_b, *, tn, vmem_limit_bytes=48 << 20):
    """feats: (B, H) f32; head_w: (H, N_pad) bf16; head_b: (1, N_pad) f32.
    Returns (B, N_pad) f32."""
    B, H = feats.shape
    _, N = head_w.shape
    assert N % 128 == 0 and tn % 128 == 0
    grid = (pl.cdiv(N, tn),)

    # Advisory cost hint: the kernel is HBM-bound on the bf16 head weight.
    cost = pl.CostEstimate(
        flops=2 * B * H * N,
        transcendentals=0,
        bytes_accessed=H * N * head_w.dtype.itemsize + N * 4 + B * N * 4 + B * H * 4,
    )

    return pl.pallas_call(
        _head_kernel,
        out_shape=jax.ShapeDtypeStruct((B, N), jnp.float32),
        grid_spec=pltpu.PrefetchScalarGridSpec(
            num_scalar_prefetch=0,
            grid=grid,
            in_specs=[
                pl.BlockSpec(feats.shape, lambda j: (0, 0)),     # replicated (B, H)
                pl.BlockSpec((H, tn), lambda j: (0, j)),         # head W column tile
                pl.BlockSpec((1, tn), lambda j: (0, j)),         # head b column tile
            ],
            out_specs=pl.BlockSpec((B, tn), lambda j: (0, j)),
        ),
        # Output-column grid is embarrassingly parallel (shards across v7x TCs).
        # Explicit VMEM limit: big tiles stay legal on v5e's 16 MiB scoped default
        # while leaving headroom under v7x's 64 MiB/TC physical VMEM.
        compiler_params=pltpu.CompilerParams(
            dimension_semantics=("parallel",),
            vmem_limit_bytes=vmem_limit_bytes,
        ),
        cost_estimate=cost,
    )(feats, head_w, head_b)


# --------------------------- parameter construction --------------------------

def init_linear(key, fan_in, fan_out, dtype=jnp.float32):
    """Torch-like nn.Linear init: U(-1/sqrt(fan_in), 1/sqrt(fan_in)); W stored (in, out)."""
    kw, kb = jax.random.split(key)
    bound = 1.0 / math.sqrt(fan_in)
    w = jax.random.uniform(kw, (fan_in, fan_out), dtype, -bound, bound)
    b = jax.random.uniform(kb, (1, fan_out), dtype, -bound, bound)
    return w, b


# ------------------------------- HyperNetwork --------------------------------

class HyperNetworkPallas:
    def __init__(self, embed_dim, hidden_dim, num_hidden_layers, backbone_param_shapes,
                 key, tn=32768, head_dtype=jnp.bfloat16):
        self.param_shapes = OrderedDict(backbone_param_shapes)

        keys = jax.random.split(key, 1 + num_hidden_layers + len(self.param_shapes))
        ki = 0

        # MLP: Linear(embed, hid), then (ReLU, Linear(hid, hid)) * num_hidden_layers
        self.mlp_params = []
        self.mlp_params.append(init_linear(keys[ki], embed_dim, hidden_dim)); ki += 1
        for _ in range(num_hidden_layers):
            self.mlp_params.append(init_linear(keys[ki], hidden_dim, hidden_dim)); ki += 1

        # Per-parameter generator heads, fused along the output (lane) axis.
        self.sizes = [int(math.prod(s)) if len(s) else 1
                      for s in self.param_shapes.values()]
        head_ws, head_bs = [], []
        for s in self.sizes:
            w, b = init_linear(keys[ki], hidden_dim, s); ki += 1
            head_ws.append(w)
            head_bs.append(b)

        self.total = sum(self.sizes)
        # Pad only to the 128-lane width (not to tn) to avoid dead weight DMA.
        self.total_pad = ((self.total + 127) // 128) * 128
        pad = self.total_pad - self.total
        w_cat = jnp.pad(jnp.concatenate(head_ws, axis=1), ((0, 0), (0, pad)))
        b_cat = jnp.pad(jnp.concatenate(head_bs, axis=1), ((0, 0), (0, pad)))
        # Head weight is ~97% of HBM traffic -> bf16 storage, f32 MXU accumulate.
        self.head_w = w_cat.astype(head_dtype)
        self.head_b = b_cat.astype(jnp.float32)        # bias bytes are negligible

        # Column tile: as large as useful, but
        #  (a) never wider than the padded total,
        #  (b) clamped so the parallel grid has >= 2 steps when the width allows it,
        #      so both v7x TensorCores get work even for small backbones.
        tn_eff = min(tn, self.total_pad)
        if self.total_pad >= 256 and pl.cdiv(self.total_pad, tn_eff) < 2:
            tn_eff = ((self.total_pad // 2 + 127) // 128) * 128
        self.tn = tn_eff

    def __call__(self, embedding):
        # embedding: (B, embed_dim); the PyTorch module uses a single client embedding.
        feats = mlp_features(embedding, self.mlp_params)            # (B, H) f32
        flat = fused_head(feats, self.head_w, self.head_b, tn=self.tn)  # (B, total_pad)
        flat = flat[0, : self.total]
        out = OrderedDict()
        off = 0
        for name, shape in self.param_shapes.items():
            n = int(math.prod(shape)) if len(shape) else 1
            out[name] = flat[off:off + n].reshape(shape)
            off += n
        return out

    # pure-JAX reference (same bf16 head-weight quantization path) for correctness check
    def reference(self, embedding):
        feats = embedding.astype(jnp.float32)
        n_layers = len(self.mlp_params)
        for i, (w, b) in enumerate(self.mlp_params):
            feats = feats @ w + b
            if i < n_layers - 1:
                feats = jnp.maximum(feats, 0.0)
        flat = jnp.dot(feats.astype(self.head_w.dtype), self.head_w,
                       preferred_element_type=jnp.float32) + self.head_b
        flat = flat[0, : self.total]
        out = OrderedDict()
        off = 0
        for name, shape in self.param_shapes.items():
            n = int(math.prod(shape)) if len(shape) else 1
            out[name] = flat[off:off + n].reshape(shape)
            off += n
        return out


# ----------------------------------- main -------------------------------------

if __name__ == "__main__":
    EMBED_DIM = 32            # args.pefll.embed_dim
    HIDDEN_DIM = 64           # args.pefll.hyper_hidden_dim
    NUM_HIDDEN_LAYERS = 1     # args.pefll.hyper_num_hidden_layers

    # Synthetic small backbone parameter shapes (what backbone.named_parameters() yields).
    BACKBONE_PARAM_SHAPES = OrderedDict([
        ("conv1.weight", (4, 1, 3, 3)),
        ("conv1.bias", (4,)),
        ("fc.weight", (10, 64)),
        ("fc.bias", (10,)),
    ])

    root = jax.random.PRNGKey(0)
    k_params, k_emb = jax.random.split(root)

    hnet = HyperNetworkPallas(EMBED_DIM, HIDDEN_DIM, NUM_HIDDEN_LAYERS,
                              BACKBONE_PARAM_SHAPES, k_params)

    embedding = jax.random.normal(k_emb, (1, EMBED_DIM), dtype=jnp.float32)

    out = hnet(embedding)
    out = jax.tree_util.tree_map(jax.block_until_ready, out)

    ref = hnet.reference(embedding)
    for name in BACKBONE_PARAM_SHAPES:
        assert out[name].shape == BACKBONE_PARAM_SHAPES[name], name
        assert jnp.allclose(out[name], ref[name], atol=1e-2, rtol=1e-2), name

    print("KERNEL_OK")
</pallas_src>

<mosaic_0001>
module attributes {stable_mosaic.version = 11 : i64} {
  func.func @_mlp_kernel(%arg0: i32, %arg1: memref<1x32xf32, #tpu.memory_space<vmem>>, %arg2: memref<32x64xf32, #tpu.memory_space<vmem>>, %arg3: memref<1x64xf32, #tpu.memory_space<vmem>>, %arg4: memref<64x64xf32, #tpu.memory_space<vmem>>, %arg5: memref<1x64xf32, #tpu.memory_space<vmem>>, %arg6: memref<1x64xf32, #tpu.memory_space<vmem>>) attributes {dimension_semantics = [#tpu.dimension_semantics<arbitrary>], iteration_bounds = array<i64: 1>, scalar_prefetch = 0 : i64, scratch_operands = 0 : i64, tpu.core_type = #tpu.core_type<tc>, window_params = [{pipeline_mode = #tpu.pipeline_mode<synchronous>, transform_indices = @transform_0, window_bounds = array<i64: 1, 32>}, {pipeline_mode = #tpu.pipeline_mode<synchronous>, transform_indices = @transform_1, window_bounds = array<i64: 32, 64>}, {pipeline_mode = #tpu.pipeline_mode<synchronous>, transform_indices = @transform_2, window_bounds = array<i64: 1, 64>}, {pipeline_mode = #tpu.pipeline_mode<synchronous>, transform_indices = @transform_3, window_bounds = array<i64: 64, 64>}, {pipeline_mode = #tpu.pipeline_mode<synchronous>, transform_indices = @transform_4, window_bounds = array<i64: 1, 64>}, {pipeline_mode = #tpu.pipeline_mode<synchronous>, transform_indices = @transform_5, window_bounds = array<i64: 1, 64>}]} {
    %c0 = arith.constant 0 : index
    %c0_0 = arith.constant 0 : index
    %0 = vector.load %arg1[%c0, %c0_0] : memref<1x32xf32, #tpu.memory_space<vmem>>, vector<1x32xf32>
    %c0_1 = arith.constant 0 : index
    %c0_2 = arith.constant 0 : index
    %1 = vector.load %arg2[%c0_1, %c0_2] : memref<32x64xf32, #tpu.memory_space<vmem>>, vector<32x64xf32>
    %c0_3 = arith.constant 0 : index
    %c0_4 = arith.constant 0 : index
    %2 = vector.load %arg3[%c0_3, %c0_4] : memref<1x64xf32, #tpu.memory_space<vmem>>, vector<1x64xf32>
    %cst = arith.constant dense<0.000000e+00> : vector<1x64xf32>
    %3 = tpu.matmul %0, %1, %cst {dimension_numbers = #tpu.dot_dimension_numbers<[1], [0], [0], [1], [0, 0, 1, 1], [], []>} : vector<1x32xf32>, vector<32x64xf32>, vector<1x64xf32> -> vector<1x64xf32>
    %4 = arith.addf %3, %2 : vector<1x64xf32>
    %cst_5 = arith.constant 0.000000e+00 : f32
    %5 = vector.broadcast %cst_5 : f32 to vector<1x64xf32>
    %6 = arith.maximumf %4, %5 : vector<1x64xf32>
    %c0_6 = arith.constant 0 : index
    %c0_7 = arith.constant 0 : index
    %7 = vector.load %arg4[%c0_6, %c0_7] : memref<64x64xf32, #tpu.memory_space<vmem>>, vector<64x64xf32>
    %c0_8 = arith.constant 0 : index
    %c0_9 = arith.constant 0 : index
    %8 = vector.load %arg5[%c0_8, %c0_9] : memref<1x64xf32, #tpu.memory_space<vmem>>, vector<1x64xf32>
    %cst_10 = arith.constant dense<0.000000e+00> : vector<1x64xf32>
    %9 = tpu.matmul %6, %7, %cst_10 {dimension_numbers = #tpu.dot_dimension_numbers<[1], [0], [0], [1], [0, 0, 1, 1], [], []>} : vector<1x64xf32>, vector<64x64xf32>, vector<1x64xf32> -> vector<1x64xf32>
    %10 = arith.addf %9, %8 : vector<1x64xf32>
    %c0_11 = arith.constant 0 : index
    %c0_12 = arith.constant 0 : index
    %11 = vector.load %arg6[%c0_11, %c0_12] : memref<1x64xf32, #tpu.memory_space<vmem>>, vector<1x64xf32>
    tpu.vector_store %arg6[%c0_11, %c0_12], %10 {strides = array<i32>} : memref<1x64xf32, #tpu.memory_space<vmem>>, vector<1x64xf32>,
    return
  }
  func.func @transform_0(%arg0: i32) -> (i32, i32) {
    %c0_i32 = arith.constant 0 : i32
    %c0_i32_0 = arith.constant 0 : i32
    %c0_i32_1 = arith.constant 0 : i32
    return %c0_i32, %c0_i32_0 : i32, i32
  }
  func.func @transform_1(%arg0: i32) -> (i32, i32) {
    %c0_i32 = arith.constant 0 : i32
    %c0_i32_0 = arith.constant 0 : i32
    %c0_i32_1 = arith.constant 0 : i32
    return %c0_i32, %c0_i32_0 : i32, i32
  }
  func.func @transform_2(%arg0: i32) -> (i32, i32) {
    %c0_i32 = arith.constant 0 : i32
    %c0_i32_0 = arith.constant 0 : i32
    %c0_i32_1 = arith.constant 0 : i32
    return %c0_i32, %c0_i32_0 : i32, i32
  }
  func.func @transform_3(%arg0: i32) -> (i32, i32) {
    %c0_i32 = arith.constant 0 : i32
    %c0_i32_0 = arith.constant 0 : i32
    %c0_i32_1 = arith.constant 0 : i32
    return %c0_i32, %c0_i32_0 : i32, i32
  }
  func.func @transform_4(%arg0: i32) -> (i32, i32) {
    %c0_i32 = arith.constant 0 : i32
    %c0_i32_0 = arith.constant 0 : i32
    %c0_i32_1 = arith.constant 0 : i32
    return %c0_i32, %c0_i32_0 : i32, i32
  }
  func.func @transform_5(%arg0: i32) -> (i32, i32) {
    %c0_i32 = arith.constant 0 : i32
    %c0_i32_0 = arith.constant 0 : i32
    %c0_i32_1 = arith.constant 0 : i32
    return %c0_i32, %c0_i32_0 : i32, i32
  }
}

</mosaic_0001>

<llo_original>
// kernel: tpu_custom_call.1
$region0: #{tpu_custom_call.1}
  #allocation0 [shape = 'u32[]', space=smem, size = 0x4, offset = 0x4, fixed_abs, tag = 'smem constant byte address 0x4 - core index']
  #allocation1 [shape = 'u32[144,128]{1,0:T(1,128)}', space=vmem, size = 0x12000, scoped, tag = 'internal scratch']
  %s0 = inlined_call_operand.hbm [shape: f32[1,32], index: 0, kind: input, shape index: {}]
  %s1 = inlined_call_operand.hbm [shape: f32[32,64], index: 1, kind: input, shape index: {}]
  %s2 = inlined_call_operand.vmem [shape: f32[1,64], index: 2, kind: input, shape index: {}]
  %s3 = inlined_call_operand.hbm [shape: f32[64,64], index: 3, kind: input, shape index: {}]
  %s4 = inlined_call_operand.vmem [shape: f32[1,64], index: 4, kind: input, shape index: {}]
  %s5 = inlined_call_operand.hbm [shape: f32[1,64], index: 5, kind: output, shape index: {}]
  %s6 = sld [smem:[#allocation0]]
  $region42: #{tpu_custom_call.1} parent=0
    _
  %s8 = ssub.s32 1, %s6
  %s9 = scalar_select 0, %s8, %s6
  $region1: #{tpu_custom_call.1} parent=0
    #allocation2 [shape = 'u8[512]{0}', space=vmem, size = 0x400, scoped, tag = 'input window, operand 0, single buffered']
    #allocation3 [shape = 's32[1]{0}', space=sflag, size = 0x4, scoped, tag = 'scoped memory for tpu_custom_call.1']
    #allocation4 [shape = 's32[1]{0}', space=sflag, size = 0x4, scoped, tag = 'scoped memory for tpu_custom_call.1']
    #allocation5 [shape = 'u8[16384]{0}', space=vmem, size = 0x4000, scoped, tag = 'input window, operand 1, single buffered']
    #allocation6 [shape = 's32[1]{0}', space=sflag, size = 0x4, scoped, tag = 'scoped memory for tpu_custom_call.1']
    #allocation7 [shape = 'u8[32768]{0}', space=vmem, size = 0x8000, scoped, tag = 'input window, operand 3, single buffered']
    #allocation8 [shape = 'u8[512]{0}', space=vmem, size = 0x400, scoped, tag = 'output window, operand 0, single buffered']
    %10 = vsyncpa [#allocation3], 0
    %11 = vsyncpa [#allocation6], 0
    %12 = vsyncpa [#allocation4], 0
    // Predicated region
    $region2: #{tpu_custom_call.1} parent=1 // pred_check
      _
    $region3: #{tpu_custom_call.1} parent=1 // pred_check_branch
      %14 = sbr.rel (0) target = $region5
    $region4: #{tpu_custom_call.1} parent=1 // pred_region
      %s16 = ssub.s32 16, 16
      %17 = vsyncadd [#allocation3], %s16
      %s19 = sshll.u32 [#allocation2], 4
      %s20 = int_to_ptr.vmem [resolvable:$true] %s19
      %22 = dma.hbm_to_vmem [thread:$0]  %s0, 16, %s20, [#allocation3]
    $region5: #{tpu_custom_call.1} parent=1 // pred_fallthru
      _
    // Predicated region
    $region6: #{tpu_custom_call.1} parent=1 // pred_check
      _
    $region7: #{tpu_custom_call.1} parent=1 // pred_check_branch
      %24 = sbr.rel (0) target = $region9
    $region8: #{tpu_custom_call.1} parent=1 // pred_region
      %s26 = ssub.s32 512, 512
      %27 = vsyncadd [#allocation6], %s26
      %s28 = sshll.u32 [#allocation5], 4
      %s29 = int_to_ptr.vmem [resolvable:$true] %s28
      %34 = dma.hbm_to_vmem [thread:$0]  %s1, 512, %s29, [#allocation6], 128, 128, 8
    $region9: #{tpu_custom_call.1} parent=1 // pred_fallthru
      _
    // Predicated region
    $region10: #{tpu_custom_call.1} parent=1 // pred_check
      _
    $region11: #{tpu_custom_call.1} parent=1 // pred_check_branch
      %36 = sbr.rel (0) target = $region13
    $region12: #{tpu_custom_call.1} parent=1 // pred_region
      _
    $region13: #{tpu_custom_call.1} parent=1 // pred_fallthru
      _
    // Predicated region
    $region14: #{tpu_custom_call.1} parent=1 // pred_check
      _
    $region15: #{tpu_custom_call.1} parent=1 // pred_check_branch
      %38 = sbr.rel (0) target = $region17
    $region16: #{tpu_custom_call.1} parent=1 // pred_region
      %s40 = ssub.s32 1024, 1024
      %41 = vsyncadd [#allocation6], %s40
      %s42 = sshll.u32 [#allocation7], 4
      %s43 = int_to_ptr.vmem [resolvable:$true] %s42
      %48 = dma.hbm_to_vmem [thread:$0]  %s3, 1024, %s43, [#allocation6], 128, 128, 8
    $region17: #{tpu_custom_call.1} parent=1 // pred_fallthru
      _
    // Predicated region
    $region18: #{tpu_custom_call.1} parent=1 // pred_check
      _
    $region19: #{tpu_custom_call.1} parent=1 // pred_check_branch
      %50 = sbr.rel (0) target = $region21
    $region20: #{tpu_custom_call.1} parent=1 // pred_region
      _
    $region21: #{tpu_custom_call.1} parent=1 // pred_fallthru
      _
    // Predicated region
    $region22: #{tpu_custom_call.1} parent=1 // pred_check
      _
    $region23: #{tpu_custom_call.1} parent=1 // pred_check_branch
      %52 = sbr.rel (0) target = $region25
    $region24: #{tpu_custom_call.1} parent=1 // pred_region
      %53 = dma.done [#allocation3], 16
    $region25: #{tpu_custom_call.1} parent=1 // pred_fallthru
      _
    // Predicated region
    $region26: #{tpu_custom_call.1} parent=1 // pred_check
      _
    $region27: #{tpu_custom_call.1} parent=1 // pred_check_branch
      %55 = sbr.rel (0) target = $region29
    $region28: #{tpu_custom_call.1} parent=1 // pred_region
      %56 = dma.done [#allocation6], 512
    $region29: #{tpu_custom_call.1} parent=1 // pred_fallthru
      _
    // Predicated region
    $region30: #{tpu_custom_call.1} parent=1 // pred_check
      _
    $region31: #{tpu_custom_call.1} parent=1 // pred_check_branch
      %58 = sbr.rel (0) target = $region33
    $region32: #{tpu_custom_call.1} parent=1 // pred_region
      %59 = dma.done [#allocation6], 1024
    $region33: #{tpu_custom_call.1} parent=1 // pred_fallthru
      _
    %v60 = vld [vmem:[#allocation2] sm:$0x1]
    %v61 = vld [vmem:[#allocation5] sm:$0xff]
    %v62 = vld [vmem:[#allocation5 + $0x8] sm:$0xff]
    %v63 = vld [vmem:[#allocation5 + $0x10] sm:$0xff]
    %v64 = vld [vmem:[#allocation5 + $0x18] sm:$0xff]
    %v65 = vld [vmem:[%s2] sm:$0x1]
    %vm66 = vcmask 261120
    %v68 = vsel %vm66, %v60, 0
    %70 = vmatprep.subr.mxu0 0.0
    %71 = vmatpush1.msra.mxu0 0.0
    %72 = vmatprep.subr.mxu0 0.0
    %73 = vmatpush1.msra.mxu0 0.0
    %74 = vmatprep.subr.mxu0 0.0
    %75 = vmatpush1.msra.mxu0 0.0
    %76 = vmatprep.subr.mxu0 0.0
    %77 = vmatpush1.msra.mxu0 0.0
    %78 = vmatprep.subr.mxu0 0.0
    %79 = vmatpush1.msra.mxu0 0.0
    %80 = vmatprep.subr.mxu0 0.0
    %81 = vmatpush1.msra.mxu0 0.0
    %82 = vmatprep.subr.mxu0 0.0
    %83 = vmatpush1.msra.mxu0 0.0
    %84 = vmatprep.subr.mxu0 0.0
    %85 = vmatpush1.msra.mxu0 0.0
    %86 = vmatprep.subr.mxu0 0.0
    %87 = vmatpush1.msra.mxu0 0.0
    %88 = vmatprep.subr.mxu0 0.0
    %89 = vmatpush1.msra.mxu0 0.0
    %90 = vmatprep.subr.mxu0 0.0
    %91 = vmatpush1.msra.mxu0 0.0
    %92 = vmatprep.subr.mxu0 0.0
    %93 = vmatpush1.msra.mxu0 0.0
    %94 = vmatprep.subr.mxu0 0.0
    %95 = vmatpush1.msra.mxu0 %v64
    %96 = vmatprep.subr.mxu0 0.0
    %97 = vmatpush1.msra.mxu0 %v63
    %98 = vmatprep.subr.mxu0 0.0
    %99 = vmatpush1.msra.mxu0 %v62
    %100 = vmatprep.subr.mxu0 0.0
    %101 = vmatpush1.msra.mxu0 %v61
    %102 = vmatprep.subr.mxu0 0.0
    %103 = vmatpush2.msra.mxu0 0.0
    %104 = vmatprep.subr.mxu0 0.0
    %105 = vmatpush2.msra.mxu0 0.0
    %106 = vmatprep.subr.mxu0 0.0
    %107 = vmatpush2.msra.mxu0 0.0
    %108 = vmatprep.subr.mxu0 0.0
    %109 = vmatpush2.msra.mxu0 0.0
    %110 = vmatprep.subr.mxu0 0.0
    %111 = vmatpush2.msra.mxu0 0.0
    %112 = vmatprep.subr.mxu0 0.0
    %113 = vmatpush2.msra.mxu0 0.0
    %114 = vmatprep.subr.mxu0 0.0
    %115 = vmatpush2.msra.mxu0 0.0
    %116 = vmatprep.subr.mxu0 0.0
    %117 = vmatpush2.msra.mxu0 0.0
    %118 = vmatprep.subr.mxu0 0.0
    %119 = vmatpush2.msra.mxu0 0.0
    %120 = vmatprep.subr.mxu0 0.0
    %121 = vmatpush2.msra.mxu0 0.0
    %122 = vmatprep.subr.mxu0 0.0
    %123 = vmatpush2.msra.mxu0 0.0
    %124 = vmatprep.subr.mxu0 0.0
    %125 = vmatpush2.msra.mxu0 0.0
    %126 = vmatprep.subr.mxu0 0.0
    %127 = vmatpush2.msra.mxu0 0.0
    %128 = vmatprep.subr.mxu0 0.0
    %129 = vmatpush2.msra.mxu0 0.0
    %130 = vmatprep.subr.mxu0 0.0
    %131 = vmatpush2.msra.mxu0 0.0
    %132 = vmatprep.subr.mxu0 0.0
    %133 = vmatpush2.msra.mxu0 0.0
    %134 = vmatprep.mubr.f32.mxu0 0.0
    %135 = vmatmul.mubr.f32.gmra.mxu0 %v68
    %v136 = vpop.f32.mrf.mxu0
    %v137 = vadd.f32 %v65, %v136
    %v138 = vpop.f32.mrf.mxu0
    %139 = vdwg.mxu0
    %v140 = vmax.f32 %v137, 0.0
    %v141 = vld [vmem:[#allocation7] sm:$0xff]
    %v142 = vld [vmem:[#allocation7 + $0x8] sm:$0xff]
    %v143 = vld [vmem:[#allocation7 + $0x10] sm:$0xff]
    %v144 = vld [vmem:[#allocation7 + $0x18] sm:$0xff]
    %v145 = vld [vmem:[#allocation7 + $0x20] sm:$0xff]
    %v146 = vld [vmem:[#allocation7 + $0x28] sm:$0xff]
    %v147 = vld [vmem:[#allocation7 + $0x30] sm:$0xff]
    %v148 = vld [vmem:[#allocation7 + $0x38] sm:$0xff]
    %v149 = vld [vmem:[%s4] sm:$0x1]
    %vm150 = vcmask 523264
    %v152 = vsel %vm150, %v140, 0
    %154 = vmatprep.subr.mxu0 0.0
    %155 = vmatpush1.msra.mxu0 0.0
    %156 = vmatprep.subr.mxu0 0.0
    %157 = vmatpush1.msra.mxu0 0.0
    %158 = vmatprep.subr.mxu0 0.0
    %159 = vmatpush1.msra.mxu0 0.0
    %160 = vmatprep.subr.mxu0 0.0
    %161 = vmatpush1.msra.mxu0 0.0
    %162 = vmatprep.subr.mxu0 0.0
    %163 = vmatpush1.msra.mxu0 0.0
    %164 = vmatprep.subr.mxu0 0.0
    %165 = vmatpush1.msra.mxu0 0.0
    %166 = vmatprep.subr.mxu0 0.0
    %167 = vmatpush1.msra.mxu0 0.0
    %168 = vmatprep.subr.mxu0 0.0
    %169 = vmatpush1.msra.mxu0 0.0
    %170 = vmatprep.subr.mxu0 0.0
    %171 = vmatpush1.msra.mxu0 %v148
    %172 = vmatprep.subr.mxu0 0.0
    %173 = vmatpush1.msra.mxu0 %v147
    %174 = vmatprep.subr.mxu0 0.0
    %175 = vmatpush1.msra.mxu0 %v146
    %176 = vmatprep.subr.mxu0 0.0
    %177 = vmatpush1.msra.mxu0 %v145
    %178 = vmatprep.subr.mxu0 0.0
    %179 = vmatpush1.msra.mxu0 %v144
    %180 = vmatprep.subr.mxu0 0.0
    %181 = vmatpush1.msra.mxu0 %v143
    %182 = vmatprep.subr.mxu0 0.0
    %183 = vmatpush1.msra.mxu0 %v142
    %184 = vmatprep.subr.mxu0 0.0
    %185 = vmatpush1.msra.mxu0 %v141
    %186 = vmatprep.subr.mxu0 0.0
    %187 = vmatpush2.msra.mxu0 0.0
    %188 = vmatprep.subr.mxu0 0.0
    %189 = vmatpush2.msra.mxu0 0.0
    %190 = vmatprep.subr.mxu0 0.0
    %191 = vmatpush2.msra.mxu0 0.0
    %192 = vmatprep.subr.mxu0 0.0
    %193 = vmatpush2.msra.mxu0 0.0
    %194 = vmatprep.subr.mxu0 0.0
    %195 = vmatpush2.msra.mxu0 0.0
    %196 = vmatprep.subr.mxu0 0.0
    %197 = vmatpush2.msra.mxu0 0.0
    %198 = vmatprep.subr.mxu0 0.0
    %199 = vmatpush2.msra.mxu0 0.0
    %200 = vmatprep.subr.mxu0 0.0
    %201 = vmatpush2.msra.mxu0 0.0
    %202 = vmatprep.subr.mxu0 0.0
    %203 = vmatpush2.msra.mxu0 0.0
    %204 = vmatprep.subr.mxu0 0.0
    %205 = vmatpush2.msra.mxu0 0.0
    %206 = vmatprep.subr.mxu0 0.0
    %207 = vmatpush2.msra.mxu0 0.0
    %208 = vmatprep.subr.mxu0 0.0
    %209 = vmatpush2.msra.mxu0 0.0
    %210 = vmatprep.subr.mxu0 0.0
    %211 = vmatpush2.msra.mxu0 0.0
    %212 = vmatprep.subr.mxu0 0.0
    %213 = vmatpush2.msra.mxu0 0.0
    %214 = vmatprep.subr.mxu0 0.0
    %215 = vmatpush2.msra.mxu0 0.0
    %216 = vmatprep.subr.mxu0 0.0
    %217 = vmatpush2.msra.mxu0 0.0
    %218 = vmatprep.mubr.f32.mxu0 0.0
    %219 = vmatmul.mubr.f32.gmra.mxu0 %v152
    %v220 = vpop.f32.mrf.mxu0
    %v221 = vadd.f32 %v149, %v220
    %v222 = vpop.f32.mrf.mxu0
    %223 = vdwg.mxu0
    %vm224 = vcmask 516096
    %225 = vst.msk [vmem:[#allocation8] sm:$0x1] %vm224, %v221
    // Predicated region
    $region34: #{tpu_custom_call.1} parent=1 // pred_check
      _
    $region35: #{tpu_custom_call.1} parent=1 // pred_check_branch
      %227 = sbr.rel (0) target = $region37
    $region36: #{tpu_custom_call.1} parent=1 // pred_region
      %s229 = ssub.s32 16, 16
      %230 = vsyncadd [#allocation4], %s229
      %s232 = sshll.u32 [#allocation8], 4
      %s233 = int_to_ptr.vmem [resolvable:$true] %s232
      %235 = dma.vmem_to_hbm [thread:$0]  %s233, 16, %s5, [#allocation4]
    $region37: #{tpu_custom_call.1} parent=1 // pred_fallthru
      _
    // Predicated region
    $region38: #{tpu_custom_call.1} parent=1 // pred_check
      _
    $region39: #{tpu_custom_call.1} parent=1 // pred_check_branch
      %237 = sbr.rel (0) target = $region41
    $region40: #{tpu_custom_call.1} parent=1 // pred_region
      %238 = dma.done [#allocation4], 16
    $region41: #{tpu_custom_call.1} parent=1 // pred_fallthru
      _
    %239 = vsyncpa [#allocation3], 1
    %240 = vsyncpa [#allocation6], 1
    %241 = vsyncpa [#allocation4], 1

</llo_original>
